<compile_context>
chip_gen: v6e
topology: v6e:2x2x1
jax: 0.10.0
libtpu: 0.0.40
codegen_flags: <defaults>
</compile_context>

<pallas_src>
import jax
import jax.numpy as jnp
from jax.experimental import pallas as pl
from jax.experimental.pallas import tpu as pltpu


_VMEM_LIMIT = 48 * 1024 * 1024    # explicit scoped-VMEM limit (< v7x 64 MiB physical)
_TILE_BUDGET = 28 * 1024 * 1024   # planning budget for (double-buffered) block buffers


def _round_dn(x, m):
    return max(m, (x // m) * m)


def _pick_batch_tile(B, per_sample_bytes, budget, cap=128):
    """Largest batch tile fitting `budget`; prefers multiples of 8 (ragged edges
    are masked by Pallas), uses the full batch when small, and may drop below 8
    for very large per-sample working sets (the leading block dim of a 3-D block
    is not lane/sublane constrained)."""
    per_sample_bytes = max(int(per_sample_bytes), 1)
    if B <= cap and B * per_sample_bytes <= budget:
        return int(B)
    tb = min(cap, B, max(1, budget // per_sample_bytes))
    if tb >= 8:
        tb = (tb // 8) * 8
    return max(1, int(tb))


# ---------------------------------------------------------------------------
# Kernel 1: fused projection  ab = x @ [a_w^T | b_w^T] + [a_b | b_b]
#   grid = (N tiles, batch tiles); the (L, TN) weight tile stays VMEM-resident
#   across the inner batch axis.  x / weights are bf16, accumulation is f32.
# ---------------------------------------------------------------------------
def _proj_kernel(x_ref, wt_ref, b_ref, o_ref):
    y = jnp.dot(x_ref[...], wt_ref[...], preferred_element_type=jnp.float32)
    o_ref[...] = (y + b_ref[...]).astype(o_ref.dtype)


def fused_projection_pallas(x, wt, bias):
    """x: (B, L) bf16, wt: (L, O) bf16 pre-transposed, bias: (O,) f32 -> (B, O) f32."""
    B, L = x.shape
    O = wt.shape[1]
    in_bytes = jnp.dtype(wt.dtype).itemsize

    # Batch tile: as large as reasonable (review: min(B, 256)).
    TB = B if B <= 256 else 256

    # N tile: largest multiple of 256 fitting the VMEM plan budget.
    if O <= 512:
        TN = O
    else:
        def fits(tn):
            per = 2 * (L * tn * in_bytes + TB * tn * 4 + tn * 4)   # wt / out / bias
            per += 2 * TB * L * in_bytes                           # x
            return per <= _TILE_BUDGET
        TN = _round_dn(O, 256)
        while TN > 256 and not fits(TN):
            TN -= 256

    n_b = pl.cdiv(B, TB)
    n_n = pl.cdiv(O, TN)

    cost = pl.CostEstimate(
        flops=2 * B * L * O,
        transcendentals=0,
        # x is re-read once per N tile (it is only resident across the inner
        # batch axis); weights are read exactly once.
        bytes_accessed=in_bytes * (n_n * B * L + L * O) + 4 * (O + B * O),
    )
    return pl.pallas_call(
        _proj_kernel,
        out_shape=jax.ShapeDtypeStruct((B, O), jnp.float32),
        grid=(n_n, n_b),                       # batch innermost: weight tile resident
        in_specs=[
            pl.BlockSpec((TB, L), lambda j, i: (i, 0)),
            pl.BlockSpec((L, TN), lambda j, i: (0, j)),
            pl.BlockSpec((1, TN), lambda j, i: (0, j)),
        ],
        out_specs=pl.BlockSpec((TB, TN), lambda j, i: (i, j)),
        compiler_params=pltpu.CompilerParams(
            dimension_semantics=("parallel", "parallel"),
            vmem_limit_bytes=_VMEM_LIMIT,
        ),
        cost_estimate=cost,
    )(x, wt, bias.reshape(1, O))


# ---------------------------------------------------------------------------
# Kernel 2: factorized weights  W[t] = a[t] @ b[t]  (+ weight_bias)
#   Only used to materialize the `weights` return value of the module API.
# ---------------------------------------------------------------------------
def _weights_kernel(a_ref, b_ref, w_ref):
    w_ref[...] = jnp.einsum(
        "til,tlo->tio", a_ref[...], b_ref[...],
        preferred_element_type=jnp.float32,
    ).astype(w_ref.dtype)


def _weights_bias_kernel(a_ref, b_ref, wb_ref, w_ref):
    w = jnp.einsum("til,tlo->tio", a_ref[...], b_ref[...],
                   preferred_element_type=jnp.float32)
    w_ref[...] = (w + wb_ref[...]).astype(w_ref.dtype)


def factorized_weights_pallas(a3, b3, weight_bias=None):
    """a3: (B, C_in, R), b3: (B, R, C_out) -> W (B, C_in, C_out)."""
    B, c_in, r = a3.shape
    c_out = b3.shape[-1]
    has_bias = weight_bias is not None
    wb_batched = has_bias and weight_bias.shape[0] != 1

    per_sample = 8 * (c_in * r + r * c_out + c_in * c_out)
    if wb_batched:
        per_sample += 8 * c_in * c_out
    fixed = 8 * c_in * c_out if (has_bias and not wb_batched) else 0
    TB = _pick_batch_tile(B, per_sample, _TILE_BUDGET - fixed)
    n_b = pl.cdiv(B, TB)

    in_specs = [
        pl.BlockSpec((TB, c_in, r), lambda i: (i, 0, 0)),
        pl.BlockSpec((TB, r, c_out), lambda i: (i, 0, 0)),
    ]
    operands = [a3, b3]
    bytes_acc = 4 * (B * c_in * r + B * r * c_out + B * c_in * c_out)
    if has_bias:
        if wb_batched:
            in_specs.append(pl.BlockSpec((TB, c_in, c_out), lambda i: (i, 0, 0)))
        else:
            # single slab reused by every batch step (no HBM broadcast copy)
            in_specs.append(pl.BlockSpec((1, c_in, c_out), lambda i: (0, 0, 0)))
        operands.append(weight_bias)
        bytes_acc += 4 * int(weight_bias.size)

    cost = pl.CostEstimate(flops=2 * B * c_in * r * c_out, transcendentals=0,
                           bytes_accessed=bytes_acc)
    return pl.pallas_call(
        _weights_bias_kernel if has_bias else _weights_kernel,
        out_shape=jax.ShapeDtypeStruct((B, c_in, c_out), jnp.float32),
        grid=(n_b,),
        in_specs=in_specs,
        out_specs=pl.BlockSpec((TB, c_in, c_out), lambda i: (i, 0, 0)),
        compiler_params=pltpu.CompilerParams(
            dimension_semantics=("parallel",),
            vmem_limit_bytes=_VMEM_LIMIT,
        ),
        cost_estimate=cost,
    )(*operands)


# ---------------------------------------------------------------------------
# Kernel 3 (fused 2+3): z_out[t] = z[t] @ (a[t] @ b[t] + weight_bias)
#   W is built once per batch tile into a VMEM scratch (pl.when on the inner
#   sequence axis) and never touches HBM.
# ---------------------------------------------------------------------------
def _factor_apply_kernel(a_ref, b_ref, z_ref, o_ref, w_scr):
    @pl.when(pl.program_id(1) == 0)
    def _():
        w_scr[...] = jnp.einsum("til,tlo->tio", a_ref[...], b_ref[...],
                                preferred_element_type=jnp.float32)
    o_ref[...] = jnp.einsum("tsi,tio->tso", z_ref[...], w_scr[...],
                            preferred_element_type=jnp.float32).astype(o_ref.dtype)


def _factor_apply_bias_kernel(a_ref, b_ref, wb_ref, z_ref, o_ref, w_scr):
    @pl.when(pl.program_id(1) == 0)
    def _():
        w = jnp.einsum("til,tlo->tio", a_ref[...], b_ref[...],
                       preferred_element_type=jnp.float32)
        w_scr[...] = w + wb_ref[...]
    o_ref[...] = jnp.einsum("tsi,tio->tso", z_ref[...], w_scr[...],
                            preferred_element_type=jnp.float32).astype(o_ref.dtype)


def factor_apply_pallas(a3, b3, z, weight_bias=None):
    """z: (B, S, C_in) -> (B, S, C_out); the per-sample W lives only in VMEM."""
    B, c_in, r = a3.shape
    c_out = b3.shape[-1]
    S = z.shape[1]
    has_bias = weight_bias is not None
    wb_batched = has_bias and weight_bias.shape[0] != 1

    def per_sample(ts):
        p = 8 * (c_in * r + r * c_out + ts * c_in + ts * c_out) + 4 * c_in * c_out
        if wb_batched:
            p += 8 * c_in * c_out
        return p

    fixed = 8 * c_in * c_out if (has_bias and not wb_batched) else 0
    budget = _TILE_BUDGET - fixed
    TS = S if S <= 512 else 512
    TB = _pick_batch_tile(B, per_sample(TS), budget)
    while TB == 1 and TS > 8 and per_sample(TS) > budget:
        TS = max(8, (TS // 2) // 8 * 8)
        TB = _pick_batch_tile(B, per_sample(TS), budget)
    # TODO(synk): for extremely large c_in*c_out a c_out tiling axis would be
    # needed to keep the W scratch inside v7x's 64 MiB VMEM; not implemented.
    n_b = pl.cdiv(B, TB)
    n_s = pl.cdiv(S, TS)

    in_specs = [
        pl.BlockSpec((TB, c_in, r), lambda i, s: (i, 0, 0)),
        pl.BlockSpec((TB, r, c_out), lambda i, s: (i, 0, 0)),
    ]
    operands = [a3, b3]
    bytes_acc = 4 * (B * c_in * r + B * r * c_out + B * S * c_in + B * S * c_out)
    if has_bias:
        if wb_batched:
            in_specs.append(pl.BlockSpec((TB, c_in, c_out), lambda i, s: (i, 0, 0)))
        else:
            in_specs.append(pl.BlockSpec((1, c_in, c_out), lambda i, s: (0, 0, 0)))
        operands.append(weight_bias)
        bytes_acc += 4 * int(weight_bias.size)
    in_specs.append(pl.BlockSpec((TB, TS, c_in), lambda i, s: (i, s, 0)))
    operands.append(z)

    cost = pl.CostEstimate(
        flops=2 * B * c_in * c_out * (r + S),
        transcendentals=0,
        bytes_accessed=bytes_acc,
    )
    kernel = _factor_apply_bias_kernel if has_bias else _factor_apply_kernel
    return pl.pallas_call(
        kernel,
        out_shape=jax.ShapeDtypeStruct((B, S, c_out), jnp.float32),
        grid=(n_b, n_s),                    # S innermost: W scratch resident
        in_specs=in_specs,
        out_specs=pl.BlockSpec((TB, TS, c_out), lambda i, s: (i, s, 0)),
        scratch_shapes=[pltpu.VMEM((TB, c_in, c_out), jnp.float32)],
        compiler_params=pltpu.CompilerParams(
            dimension_semantics=("parallel", "arbitrary"),
            vmem_limit_bytes=_VMEM_LIMIT,
        ),
        cost_estimate=cost,
    )(*operands)


# ---------------------------------------------------------------------------
# Kernel 4: plain per-sample apply  z_out[t] = z[t] @ W[t]
#   Used for the force_identity path (weights given directly).
# ---------------------------------------------------------------------------
def _apply_kernel(z_ref, w_ref, o_ref):
    o_ref[...] = jnp.einsum("tsi,tio->tso", z_ref[...], w_ref[...],
                            preferred_element_type=jnp.float32).astype(o_ref.dtype)


def apply_weights_pallas(z, weights):
    """z: (B, S, C_in), weights: (B, C_in, C_out) -> (B, S, C_out)."""
    B, S, c_in = z.shape
    c_out = weights.shape[-1]

    def per_sample(ts):
        return 8 * (ts * c_in + c_in * c_out + ts * c_out)

    TS = S if S <= 512 else 512
    TB = _pick_batch_tile(B, per_sample(TS), _TILE_BUDGET)
    while TB == 1 and TS > 8 and per_sample(TS) > _TILE_BUDGET:
        TS = max(8, (TS // 2) // 8 * 8)
        TB = _pick_batch_tile(B, per_sample(TS), _TILE_BUDGET)
    n_b = pl.cdiv(B, TB)
    n_s = pl.cdiv(S, TS)

    cost = pl.CostEstimate(
        flops=2 * B * S * c_in * c_out, transcendentals=0,
        bytes_accessed=4 * (B * S * c_in + B * c_in * c_out + B * S * c_out))
    return pl.pallas_call(
        _apply_kernel,
        out_shape=jax.ShapeDtypeStruct((B, S, c_out), jnp.float32),
        grid=(n_b, n_s),
        in_specs=[
            pl.BlockSpec((TB, TS, c_in), lambda i, s: (i, s, 0)),
            pl.BlockSpec((TB, c_in, c_out), lambda i, s: (i, 0, 0)),
        ],
        out_specs=pl.BlockSpec((TB, TS, c_out), lambda i, s: (i, s, 0)),
        compiler_params=pltpu.CompilerParams(
            dimension_semantics=("parallel", "arbitrary"),
            vmem_limit_bytes=_VMEM_LIMIT,
        ),
        cost_estimate=cost,
    )(z, weights)


# ---------------------------------------------------------------------------
# HyperNetworkLayer wrapper (init + forward), mirroring the torch module API.
# ---------------------------------------------------------------------------
def init_hypernetwork_layer(key, latent_channels, layer_latent,
                            layer_in_channels, layer_out_channels, bias=True):
    ka, kb, kba, kbb = jax.random.split(key, 4)
    out_a = layer_latent * layer_in_channels
    out_b = layer_latent * layer_out_channels
    scale = 1.0 / float(latent_channels) ** 0.5
    # Stored pre-transposed ("x @ W" layout), concatenated, and in bfloat16:
    # the projection kernel is weight-read bound, so halving weight bytes is
    # ~2x on the dominant HBM term; accumulation stays f32 in the kernel.
    a_wt = jax.random.uniform(ka, (latent_channels, out_a),
                              minval=-scale, maxval=scale, dtype=jnp.float32)
    b_wt = jax.random.uniform(kb, (latent_channels, out_b),
                              minval=-scale, maxval=scale, dtype=jnp.float32)
    a_b = (jax.random.uniform(kba, (out_a,), minval=-scale, maxval=scale,
                              dtype=jnp.float32)
           if bias else jnp.zeros((out_a,), jnp.float32))
    b_b = (jax.random.uniform(kbb, (out_b,), minval=-scale, maxval=scale,
                              dtype=jnp.float32)
           if bias else jnp.zeros((out_b,), jnp.float32))
    params = {
        "ab_wt": jnp.concatenate([a_wt, b_wt], axis=1).astype(jnp.bfloat16),
        "ab_b": jnp.concatenate([a_b, b_b], axis=0),      # f32
    }
    cfg = dict(latent_channels=latent_channels, layer_latent=layer_latent,
               layer_in_channels=layer_in_channels,
               layer_out_channels=layer_out_channels)
    return params, cfg


def hypernetwork_layer_forward(params, cfg, x, weight_bias=None,
                               force_identity=False):
    """x: (B, latent_channels).  Returns (weights, forward_fn)."""
    B = x.shape[0]
    c_in = cfg["layer_in_channels"]
    c_out = cfg["layer_out_channels"]
    r = cfg["layer_latent"]
    out_a = r * c_in

    if force_identity:
        eye = jnp.eye(c_in, c_out, dtype=jnp.float32)
        weights = jnp.broadcast_to(eye[None, ...], (B, c_in, c_out))

        def forward_id(z):
            if z.ndim != 3:
                z = z[:, None, :]
            return apply_weights_pallas(z.astype(jnp.float32), weights)

        return weights, forward_id

    wb = None
    if weight_bias is not None:
        wb = jnp.asarray(weight_bias, jnp.float32)
        if wb.ndim == 2:
            wb = wb[None, ...]
        wb = jnp.broadcast_to(wb, (wb.shape[0], c_in, c_out))

    ab = fused_projection_pallas(x.astype(jnp.bfloat16),
                                 params["ab_wt"], params["ab_b"])
    # TODO(synk): the torch .view()-equivalent split/reshape stays in XLA glue;
    # re-ordering the `a` columns at init to make it a lane-aligned (B, r, c_in)
    # split needs a transposed-LHS batched contraction downstream, which we keep
    # out of the Mosaic path for robustness.
    a3 = ab[:, :out_a].reshape(B, c_in, r)
    b3 = ab[:, out_a:].reshape(B, r, c_out)

    # Materialized only because the module API returns `weights`; the apply
    # path below never reads it back from HBM.
    weights = factorized_weights_pallas(a3, b3, wb)

    def forward(z):
        if z.ndim != 3:
            z = z[:, None, :]
        # Fused kernels 2+3: W is rebuilt in VMEM from the factors and applied
        # in the same grid step (no HBM round-trip of the generated weights).
        return factor_apply_pallas(a3, b3, z.astype(jnp.float32), wb)

    return weights, forward


# ---------------------------------------------------------------------------
if __name__ == "__main__":
    B = 2
    latent_channels = 32
    layer_latent = 8
    layer_in_channels = 16
    layer_out_channels = 16
    seq = 8

    key = jax.random.PRNGKey(0)
    kp, kx, kz, kwb = jax.random.split(key, 4)

    params, cfg = init_hypernetwork_layer(
        kp, latent_channels, layer_latent, layer_in_channels,
        layer_out_channels, bias=True)

    x = jax.random.normal(kx, (B, latent_channels), dtype=jnp.float32)
    z = jax.random.normal(kz, (B, seq, layer_in_channels), dtype=jnp.float32)
    wbias = jax.random.normal(kwb, (layer_in_channels, layer_out_channels),
                              dtype=jnp.float32)

    # --- main path ---------------------------------------------------------
    weights, fwd = hypernetwork_layer_forward(params, cfg, x)
    z_out = fwd(z)
    weights = jax.block_until_ready(weights)
    z_out = jax.block_until_ready(z_out)

    # Pure-JAX reference using the same bf16-rounded operands as the kernels.
    out_a = layer_latent * layer_in_channels
    x_r = x.astype(jnp.bfloat16).astype(jnp.float32)
    wt_r = params["ab_wt"].astype(jnp.float32)
    ab_ref = x_r @ wt_r + params["ab_b"]
    a_ref = ab_ref[:, :out_a].reshape(B, layer_in_channels, layer_latent)
    b_ref = ab_ref[:, out_a:].reshape(B, layer_latent, layer_out_channels)
    w_ref = jnp.einsum("bil,blo->bio", a_ref, b_ref)
    z_ref = jnp.einsum("bsi,bio->bso", z, w_ref)

    assert weights.shape == (B, layer_in_channels, layer_out_channels)
    assert z_out.shape == (B, seq, layer_out_channels)
    assert jnp.allclose(weights, w_ref, atol=2e-3, rtol=2e-3)
    assert jnp.allclose(z_out, z_ref, atol=2e-3, rtol=2e-3)

    # --- weight_bias path --------------------------------------------------
    weights_wb, fwd_wb = hypernetwork_layer_forward(params, cfg, x,
                                                    weight_bias=wbias)
    z_out_wb = jax.block_until_ready(fwd_wb(z))
    weights_wb = jax.block_until_ready(weights_wb)
    z_ref_wb = jnp.einsum("bsi,bio->bso", z, w_ref + wbias[None])
    assert jnp.allclose(weights_wb, w_ref + wbias[None], atol=2e-3, rtol=2e-3)
    assert jnp.allclose(z_out_wb, z_ref_wb, atol=2e-3, rtol=2e-3)

    # --- force_identity + 2-D z promotion ----------------------------------
    w_id, fwd_id = hypernetwork_layer_forward(params, cfg, x,
                                              force_identity=True)
    z2 = jax.block_until_ready(fwd_id(z[:, 0, :]))
    assert z2.shape == (B, 1, layer_out_channels)
    assert jnp.allclose(z2[:, 0, :], z[:, 0, :], atol=1e-4)

    print("KERNEL_OK")
</pallas_src>

<mosaic_0001>
module attributes {stable_mosaic.version = 11 : i64} {
  func.func @_proj_kernel(%arg0: i32, %arg1: i32, %arg2: memref<2x32xbf16, #tpu.memory_space<vmem>>, %arg3: memref<32x256xbf16, #tpu.memory_space<vmem>>, %arg4: memref<1x256xf32, #tpu.memory_space<vmem>>, %arg5: memref<2x256xf32, #tpu.memory_space<vmem>>) attributes {dimension_semantics = [#tpu.dimension_semantics<parallel>, #tpu.dimension_semantics<parallel>], iteration_bounds = array<i64: 1, 1>, scalar_prefetch = 0 : i64, scratch_operands = 0 : i64, tpu.core_type = #tpu.core_type<tc>, window_params = [{transform_indices = @transform_0, window_bounds = array<i64: 2, 32>}, {transform_indices = @transform_1, window_bounds = array<i64: 32, 256>}, {transform_indices = @transform_2, window_bounds = array<i64: 1, 256>}, {transform_indices = @transform_3, window_bounds = array<i64: 2, 256>}]} {
    %c0 = arith.constant 0 : index
    %c0_0 = arith.constant 0 : index
    %0 = vector.load %arg2[%c0, %c0_0] : memref<2x32xbf16, #tpu.memory_space<vmem>>, vector<2x32xbf16>
    %c0_1 = arith.constant 0 : index
    %c0_2 = arith.constant 0 : index
    %1 = vector.load %arg3[%c0_1, %c0_2] : memref<32x256xbf16, #tpu.memory_space<vmem>>, vector<32x256xbf16>
    %cst = arith.constant dense<0.000000e+00> : vector<2x256xf32>
    %2 = tpu.matmul %0, %1, %cst {dimension_numbers = #tpu.dot_dimension_numbers<[1], [0], [0], [1], [0, 0, 1, 1], [], []>} : vector<2x32xbf16>, vector<32x256xbf16>, vector<2x256xf32> -> vector<2x256xf32>
    %c0_3 = arith.constant 0 : index
    %c0_4 = arith.constant 0 : index
    %3 = vector.load %arg4[%c0_3, %c0_4] : memref<1x256xf32, #tpu.memory_space<vmem>>, vector<1x256xf32>
    %4 = vector.broadcast %3 : vector<1x256xf32> to vector<2x256xf32>
    %5 = arith.addf %2, %4 : vector<2x256xf32>
    %c0_5 = arith.constant 0 : index
    %c0_6 = arith.constant 0 : index
    %6 = vector.load %arg5[%c0_5, %c0_6] : memref<2x256xf32, #tpu.memory_space<vmem>>, vector<2x256xf32>
    tpu.vector_store %arg5[%c0_5, %c0_6], %5 {strides = array<i32>} : memref<2x256xf32, #tpu.memory_space<vmem>>, vector<2x256xf32>,
    return
  }
  func.func @transform_0(%arg0: i32, %arg1: i32) -> (i32, i32) {
    %c0_i32 = arith.constant 0 : i32
    %c0_i32_0 = arith.constant 0 : i32
    return %arg1, %c0_i32 : i32, i32
  }
  func.func @transform_1(%arg0: i32, %arg1: i32) -> (i32, i32) {
    %c0_i32 = arith.constant 0 : i32
    %c0_i32_0 = arith.constant 0 : i32
    return %c0_i32, %arg0 : i32, i32
  }
  func.func @transform_2(%arg0: i32, %arg1: i32) -> (i32, i32) {
    %c0_i32 = arith.constant 0 : i32
    %c0_i32_0 = arith.constant 0 : i32
    return %c0_i32, %arg0 : i32, i32
  }
  func.func @transform_3(%arg0: i32, %arg1: i32) -> (i32, i32) {
    %c0_i32 = arith.constant 0 : i32
    return %arg1, %arg0 : i32, i32
  }
}

</mosaic_0001>

<llo_original>
// kernel: tpu_custom_call.1
$region0: #{tpu_custom_call.1}
  #allocation0 [shape = 'u32[]', space=smem, size = 0x4, offset = 0x4, fixed_abs, tag = 'smem constant byte address 0x4 - core index']
  #allocation1 [shape = 'u32[144,128]{1,0:T(1,128)}', space=vmem, size = 0x12000, scoped, tag = 'internal scratch']
  %s0 = inlined_call_operand.hbm [shape: bf16[2,32], index: 0, kind: input, shape index: {}]
  %s1 = inlined_call_operand.hbm [shape: bf16[32,256], index: 1, kind: input, shape index: {}]
  %s2 = inlined_call_operand.vmem [shape: f32[1,256], index: 2, kind: input, shape index: {}]
  %s3 = inlined_call_operand.hbm [shape: f32[2,256], index: 3, kind: output, shape index: {}]
  %s4 = sld [smem:[#allocation0]]
  $region30: #{tpu_custom_call.1} parent=0
    _
  %s6 = ssub.s32 1, %s4
  %s7 = scalar_select 0, %s6, %s4
  $region1: #{tpu_custom_call.1} parent=0
    #allocation2 [shape = 'u8[512]{0}', space=vmem, size = 0x400, scoped, tag = 'input window, operand 0, single buffered']
    #allocation3 [shape = 's32[1]{0}', space=sflag, size = 0x4, scoped, tag = 'scoped memory for tpu_custom_call.1']
    #allocation4 [shape = 's32[1]{0}', space=sflag, size = 0x4, scoped, tag = 'scoped memory for tpu_custom_call.1']
    #allocation5 [shape = 'u8[16384]{0}', space=vmem, size = 0x4000, scoped, tag = 'input window, operand 1, single buffered']
    #allocation6 [shape = 's32[1]{0}', space=sflag, size = 0x4, scoped, tag = 'scoped memory for tpu_custom_call.1']
    #allocation7 [shape = 'u8[2048]{0}', space=vmem, size = 0x800, scoped, tag = 'output window, operand 0, single buffered']
    %8 = vsyncpa [#allocation3], 0
    %9 = vsyncpa [#allocation6], 0
    %10 = vsyncpa [#allocation4], 0
    // Predicated region
    $region2: #{tpu_custom_call.1} parent=1 // pred_check
      _
    $region3: #{tpu_custom_call.1} parent=1 // pred_check_branch
      %12 = sbr.rel (0) target = $region5
    $region4: #{tpu_custom_call.1} parent=1 // pred_region
      %s14 = ssub.s32 16, 16
      %15 = vsyncadd [#allocation3], %s14
      %s17 = sshll.u32 [#allocation2], 4
      %s18 = int_to_ptr.vmem [resolvable:$true] %s17
      %20 = dma.hbm_to_vmem [thread:$0]  %s0, 16, %s18, [#allocation3]
    $region5: #{tpu_custom_call.1} parent=1 // pred_fallthru
      _
    // Predicated region
    $region6: #{tpu_custom_call.1} parent=1 // pred_check
      _
    $region7: #{tpu_custom_call.1} parent=1 // pred_check_branch
      %22 = sbr.rel (0) target = $region9
    $region8: #{tpu_custom_call.1} parent=1 // pred_region
      %s24 = ssub.s32 512, 512
      %25 = vsyncadd [#allocation6], %s24
      %s26 = sshll.u32 [#allocation5], 4
      %s27 = int_to_ptr.vmem [resolvable:$true] %s26
      %32 = dma.hbm_to_vmem [thread:$0]  %s1, 512, %s27, [#allocation6], 128, 128, 8
    $region9: #{tpu_custom_call.1} parent=1 // pred_fallthru
      _
    // Predicated region
    $region10: #{tpu_custom_call.1} parent=1 // pred_check
      _
    $region11: #{tpu_custom_call.1} parent=1 // pred_check_branch
      %34 = sbr.rel (0) target = $region13
    $region12: #{tpu_custom_call.1} parent=1 // pred_region
      _
    $region13: #{tpu_custom_call.1} parent=1 // pred_fallthru
      _
    // Predicated region
    $region14: #{tpu_custom_call.1} parent=1 // pred_check
      _
    $region15: #{tpu_custom_call.1} parent=1 // pred_check_branch
      %36 = sbr.rel (0) target = $region17
    $region16: #{tpu_custom_call.1} parent=1 // pred_region
      %37 = dma.done [#allocation3], 16
    $region17: #{tpu_custom_call.1} parent=1 // pred_fallthru
      _
    // Predicated region
    $region18: #{tpu_custom_call.1} parent=1 // pred_check
      _
    $region19: #{tpu_custom_call.1} parent=1 // pred_check_branch
      %39 = sbr.rel (0) target = $region21
    $region20: #{tpu_custom_call.1} parent=1 // pred_region
      %40 = dma.done [#allocation6], 512
    $region21: #{tpu_custom_call.1} parent=1 // pred_fallthru
      _
    %v42 = vld [vmem:[#allocation2] sm:$0x1]
    %v43 = vld [vmem:[#allocation5] sm:$0xff]
    %v44 = vld [vmem:[#allocation5 + $0x8] sm:$0xff]
    %v45 = vld [vmem:[#allocation5 + $0x10] sm:$0xff]
    %v46 = vld [vmem:[#allocation5 + $0x18] sm:$0xff]
    %v47 = vld [vmem:[%s2] sm:$0x3]
    %v49 = vlaneseq
    %v50 = vshrl.u32 %v49, 7
    %v51 = vsub.s32 0, %v50
    %v52 = vrot.slane %v47, %v51
    %v53 = vlaneseq
    %v54 = vshrl.u32 %v53, 7
    %v55 = vsub.s32 1, %v54
    %v56 = vrot.slane %v47, %v55
    %v63 = vunpack.c.l.b16 %v43
    %v64 = vunpack.c.h.b16 %v43
    %v65 = vunpack.c.l.b16 %v44
    %v66 = vunpack.c.h.b16 %v44
    %v67 = vunpack.c.l.b16 %v45
    %v68 = vunpack.c.h.b16 %v45
    %v69 = vunpack.c.l.b16 %v46
    %v70 = vunpack.c.h.b16 %v46
    %v71 = vpack.c.b16 %v65, %v63
    %v72 = vpack.c.b16 %v66, %v64
    %v73 = vpack.c.b16 %v69, %v67
    %v74 = vpack.c.b16 %v70, %v68
    %vm79 = vcmask 261120
    %v81 = vsel %vm79, %v42, 0
    %83 = vmatprep.subr.bf16.mxu0 0
    %84 = vmatpush1.bf16.msra.mxu0 0
    %85 = vmatprep.subr.bf16.mxu0 0
    %86 = vmatpush1.bf16.msra.mxu0 0
    %87 = vmatprep.subr.bf16.mxu0 0
    %88 = vmatpush1.bf16.msra.mxu0 0
    %89 = vmatprep.subr.bf16.mxu0 0
    %90 = vmatpush1.bf16.msra.mxu0 0
    %91 = vmatprep.subr.bf16.mxu0 0
    %92 = vmatpush1.bf16.msra.mxu0 0
    %93 = vmatprep.subr.bf16.mxu0 0
    %94 = vmatpush1.bf16.msra.mxu0 0
    %95 = vmatprep.subr.bf16.mxu0 %v74
    %96 = vmatpush1.bf16.msra.mxu0 %v73
    %97 = vmatprep.subr.bf16.mxu0 %v72
    %98 = vmatpush1.bf16.msra.mxu0 %v71
    %99 = vmatprep.subr.bf16.mxu0 0
    %100 = vmatpush2.bf16.msra.mxu0 0
    %101 = vmatprep.subr.bf16.mxu0 0
    %102 = vmatpush2.bf16.msra.mxu0 0
    %103 = vmatprep.subr.bf16.mxu0 0
    %104 = vmatpush2.bf16.msra.mxu0 0
    %105 = vmatprep.subr.bf16.mxu0 0
    %106 = vmatpush2.bf16.msra.mxu0 0
    %107 = vmatprep.subr.bf16.mxu0 0
    %108 = vmatpush2.bf16.msra.mxu0 0
    %109 = vmatprep.subr.bf16.mxu0 0
    %110 = vmatpush2.bf16.msra.mxu0 0
    %111 = vmatprep.subr.bf16.mxu0 0
    %112 = vmatpush2.bf16.msra.mxu0 0
    %113 = vmatprep.subr.bf16.mxu0 0
    %114 = vmatpush2.bf16.msra.mxu0 0
    %115 = vmatprep.mubr.bf16.mxu0 0
    %116 = vmatmul.mubr.bf16.gmra.mxu0 %v81
    %v117 = vpop.f32.mrf.mxu0
    %v118 = vadd.f32 %v52, %v117
    %v119 = vpop.f32.mrf.mxu0
    %v120 = vadd.f32 %v56, %v119
    %v121 = vpop.f32.mrf.mxu0
    %v122 = vpop.f32.mrf.mxu0
    %123 = vdwg.mxu0
    %v126 = vcombine.low %v118, %v120
    %v128 = vunpack.c.l.s4 1983009808
    %v129 = vunpack.c.0.s8 %v128
    %v130 = vlaneseq
    %v131 = vshrl.u32 %v130, 7
    %v132 = vsub.s32 %v129, %v131
    %v133 = vrot.slane %v126, %v132
    %135 = vst [vmem:[#allocation7] sm:$0xf] %v133
    // Predicated region
    $region22: #{tpu_custom_call.1} parent=1 // pred_check
      _
    $region23: #{tpu_custom_call.1} parent=1 // pred_check_branch
      %137 = sbr.rel (0) target = $region25
    $region24: #{tpu_custom_call.1} parent=1 // pred_region
      %s139 = ssub.s32 64, 64
      %140 = vsyncadd [#allocation4], %s139
      %s142 = sshll.u32 [#allocation7], 4
      %s143 = int_to_ptr.vmem [resolvable:$true] %s142
      %145 = dma.vmem_to_hbm [thread:$0]  %s143, 64, %s3, [#allocation4]
    $region25: #{tpu_custom_call.1} parent=1 // pred_fallthru
      _
    // Predicated region
    $region26: #{tpu_custom_call.1} parent=1 // pred_check
      _
    $region27: #{tpu_custom_call.1} parent=1 // pred_check_branch
      %147 = sbr.rel (0) target = $region29
    $region28: #{tpu_custom_call.1} parent=1 // pred_region
      %148 = dma.done [#allocation4], 64
    $region29: #{tpu_custom_call.1} parent=1 // pred_fallthru
      _
    %149 = vsyncpa [#allocation3], 1
    %150 = vsyncpa [#allocation6], 1
    %151 = vsyncpa [#allocation4], 1

</llo_original>
